<compile_context>
chip_gen: v6e
topology: v6e:2x2x1
jax: 0.10.0
libtpu: 0.0.40
codegen_flags: <defaults>
</compile_context>

<pallas_src>
import jax
import jax.numpy as jnp
from jax.experimental import pallas as pl
from jax.experimental.pallas import tpu as pltpu


def _round_up(x, m):
    return ((x + m - 1) // m) * m


def _aucm_accum_kernel(yp_ref, yt_ref, a_ref, b_ref,
                       s_sqp_ref, s_sqn_ref, s_lp_ref, s_ln_ref,
                       c_sqp_ref, c_sqn_ref, c_lp_ref, c_ln_ref):
    out_refs = (s_sqp_ref, s_sqn_ref, s_lp_ref, s_ln_ref,
                c_sqp_ref, c_sqn_ref, c_lp_ref, c_ln_ref)

    # Zero the resident accumulators once, at the first grid step.
    @pl.when(pl.program_id(0) == 0)
    def _():
        for r in out_refs:
            r[...] = jnp.zeros_like(r)

    yp = yp_ref[...]                               # (TN, L) f32
    yt = yt_ref[...].astype(jnp.int32)             # (TN, L) int8 -> i32
    pos = (yt == 1).astype(jnp.float32)            # exact-1 labels
    neg = (yt == 0).astype(jnp.float32)            # exact-0 labels

    da = yp - a_ref[...]                           # broadcast (1, L)
    db = yp - b_ref[...]
    sq_pos = da * da * pos                         # (y - a)^2 * pos_mask
    sq_neg = db * db * neg                         # (y - b)^2 * neg_mask
    lin_pos = yp * pos                             # y * pos_mask
    lin_neg = yp * neg                             # y * neg_mask

    terms = (sq_pos, sq_neg, lin_pos, lin_neg)

    # Masked sums (numerators of torch's sum/count_nonzero mean).
    for ref, t in zip(out_refs[:4], terms):
        ref[...] += jnp.sum(t, axis=0, keepdims=True)

    # count_nonzero of the masked products themselves (exact torch semantics).
    for ref, t in zip(out_refs[4:], terms):
        ref[...] += jnp.sum((t != 0.0).astype(jnp.float32), axis=0, keepdims=True)


def aucm_multilabel_v2(y_pred, y_true, a, b, alpha, *, margin=1.0):
    """Forward pass of AUCM_MultiLabel_V2. Returns a scalar f32 loss."""
    n, c = y_pred.shape
    yp = y_pred.astype(jnp.float32)

    # int8 label encoding: 1 -> positive, 0 -> negative, -1 -> neither/padding.
    yt_f = y_true.astype(jnp.float32)
    yt = jnp.where(yt_f == 1.0, 1, jnp.where(yt_f == 0.0, 0, -1)).astype(jnp.int8)

    # ---- lane packing: fold R samples into the 128-lane dimension ----
    r_pack = max(1, 128 // c)
    lanes = r_pack * c
    rows = pl.cdiv(n, r_pack)

    # ---- batch tiling: ~2 MiB f32 tile, sublanes multiple of 32 (int8 tiling) ----
    tn = max(32, min(2048, (2 * 1024 * 1024) // (lanes * 4)))
    tn = _round_up(tn, 32)
    tn = min(tn, _round_up(rows, 32))
    rows_p = _round_up(rows, tn)
    n_pad = rows_p * r_pack

    yp = jnp.pad(yp, ((0, n_pad - n), (0, 0)))
    yt = jnp.pad(yt, ((0, n_pad - n), (0, 0)), constant_values=-1)
    yp = yp.reshape(rows_p, lanes)                 # row-major: lane r*C + cls
    yt = yt.reshape(rows_p, lanes)

    a_l = jnp.tile(a.reshape(1, c).astype(jnp.float32), (1, r_pack))   # (1, L)
    b_l = jnp.tile(b.reshape(1, c).astype(jnp.float32), (1, r_pack))   # (1, L)

    grid = (rows_p // tn,)
    acc_spec = pl.BlockSpec((1, lanes), lambda i: (0, 0))
    acc_shape = jax.ShapeDtypeStruct((1, lanes), jnp.float32)

    cost = pl.CostEstimate(
        flops=int(12 * rows_p * lanes),
        transcendentals=0,
        bytes_accessed=int(rows_p * lanes * (4 + 1) + 2 * lanes * 4 + 8 * lanes * 4),
    )

    outs = pl.pallas_call(
        _aucm_accum_kernel,
        out_shape=(acc_shape,) * 8,
        grid=grid,
        in_specs=[
            pl.BlockSpec((tn, lanes), lambda i: (i, 0)),   # y_pred tile (f32)
            pl.BlockSpec((tn, lanes), lambda i: (i, 0)),   # y_true tile (int8)
            pl.BlockSpec((1, lanes), lambda i: (0, 0)),    # a, lane-packed
            pl.BlockSpec((1, lanes), lambda i: (0, 0)),    # b, lane-packed
        ],
        out_specs=(acc_spec,) * 8,
        compiler_params=pltpu.CompilerParams(
            dimension_semantics=("arbitrary",),
            vmem_limit_bytes=32 * 1024 * 1024,
        ),
        cost_estimate=cost,
    )(yp, yt, a_l, b_l)

    # ---- finalize (tiny, plain JAX on (C,) data) ----
    def collapse(x):                               # (1, R*C) -> (C,)
        return x.reshape(r_pack, c).sum(axis=0)

    s_sqp, s_sqn, s_lp, s_ln, c_sqp, c_sqn, c_lp, c_ln = map(collapse, outs)
    alpha = alpha.reshape(c).astype(jnp.float32)

    # torch: mean(t) = sum(t) / count_nonzero(t)  (global counts; 0-count
    # classes produce inf/nan exactly like the reference).
    m_sq_pos = s_sqp / c_sqp
    m_sq_neg = s_sqn / c_sqn
    m_pos = s_lp / c_lp
    m_neg = s_ln / c_ln

    per_class = (m_sq_pos + m_sq_neg
                 + 2.0 * alpha * (margin + m_neg - m_pos)
                 - alpha * alpha)
    return jnp.sum(per_class)


def _reference(y_pred, y_true, a, b, alpha, margin=1.0):
    """Pure-JAX reference mirroring the PyTorch per-class loop."""
    total = 0.0
    num_classes = y_pred.shape[1]

    def nz_mean(t):
        return jnp.sum(t) / jnp.count_nonzero(t)

    for idx in range(num_classes):
        yp = y_pred[:, idx:idx + 1]
        yt = y_true[:, idx:idx + 1]
        pos = (yt == 1.0).astype(jnp.float32)
        neg = (yt == 0.0).astype(jnp.float32)
        loss = (nz_mean((yp - a[idx]) ** 2 * pos)
                + nz_mean((yp - b[idx]) ** 2 * neg)
                + 2 * alpha[idx] * (margin + nz_mean(yp * neg) - nz_mean(yp * pos))
                - alpha[idx] ** 2)
        total = total + loss
    return total


if __name__ == "__main__":
    num_classes = 10
    batch = 8
    margin = 1.0

    key = jax.random.PRNGKey(0)
    k1, k2, k3, k4, k5 = jax.random.split(key, 5)
    y_pred = jax.random.uniform(k1, (batch, num_classes), dtype=jnp.float32)
    y_true = (jax.random.uniform(k2, (batch, num_classes)) > 0.5).astype(jnp.float32)
    # Ensure every class has at least one positive and one negative sample so
    # neither kernel nor reference divides by a zero count (matches real use).
    y_true = y_true.at[0, :].set(1.0).at[1, :].set(0.0)

    # a, b, alpha are learnable params of the module (init = zeros); use small
    # random values here so the a/b/alpha terms are actually exercised.
    a = jax.random.uniform(k3, (num_classes,), dtype=jnp.float32)
    b = jax.random.uniform(k4, (num_classes,), dtype=jnp.float32)
    alpha = jax.random.uniform(k5, (num_classes,), dtype=jnp.float32)

    loss = aucm_multilabel_v2(y_pred, y_true, a, b, alpha, margin=margin)
    loss = jax.block_until_ready(loss)

    ref = _reference(y_pred, y_true, a, b, alpha, margin=margin)
    assert jnp.allclose(loss, ref, rtol=1e-5, atol=1e-5), (loss, ref)

    print("KERNEL_OK")
</pallas_src>

<mosaic_0001>
module attributes {stable_mosaic.version = 11 : i64} {
  func.func @_aucm_accum_kernel(%arg0: i32, %arg1: memref<32x120xf32, #tpu.memory_space<vmem>>, %arg2: memref<32x120xi8, #tpu.memory_space<vmem>>, %arg3: memref<1x120xf32, #tpu.memory_space<vmem>>, %arg4: memref<1x120xf32, #tpu.memory_space<vmem>>, %arg5: memref<1x120xf32, #tpu.memory_space<vmem>>, %arg6: memref<1x120xf32, #tpu.memory_space<vmem>>, %arg7: memref<1x120xf32, #tpu.memory_space<vmem>>, %arg8: memref<1x120xf32, #tpu.memory_space<vmem>>, %arg9: memref<1x120xf32, #tpu.memory_space<vmem>>, %arg10: memref<1x120xf32, #tpu.memory_space<vmem>>, %arg11: memref<1x120xf32, #tpu.memory_space<vmem>>, %arg12: memref<1x120xf32, #tpu.memory_space<vmem>>) attributes {dimension_semantics = [#tpu.dimension_semantics<arbitrary>], iteration_bounds = array<i64: 1>, scalar_prefetch = 0 : i64, scratch_operands = 0 : i64, tpu.core_type = #tpu.core_type<tc>, window_params = [{transform_indices = @transform_0, window_bounds = array<i64: 32, 120>}, {transform_indices = @transform_1, window_bounds = array<i64: 32, 120>}, {pipeline_mode = #tpu.pipeline_mode<synchronous>, transform_indices = @transform_2, window_bounds = array<i64: 1, 120>}, {pipeline_mode = #tpu.pipeline_mode<synchronous>, transform_indices = @transform_3, window_bounds = array<i64: 1, 120>}, {pipeline_mode = #tpu.pipeline_mode<synchronous>, transform_indices = @transform_4, window_bounds = array<i64: 1, 120>}, {pipeline_mode = #tpu.pipeline_mode<synchronous>, transform_indices = @transform_5, window_bounds = array<i64: 1, 120>}, {pipeline_mode = #tpu.pipeline_mode<synchronous>, transform_indices = @transform_6, window_bounds = array<i64: 1, 120>}, {pipeline_mode = #tpu.pipeline_mode<synchronous>, transform_indices = @transform_7, window_bounds = array<i64: 1, 120>}, {pipeline_mode = #tpu.pipeline_mode<synchronous>, transform_indices = @transform_8, window_bounds = array<i64: 1, 120>}, {pipeline_mode = #tpu.pipeline_mode<synchronous>, transform_indices = @transform_9, window_bounds = array<i64: 1, 120>}, {pipeline_mode = #tpu.pipeline_mode<synchronous>, transform_indices = @transform_10, window_bounds = array<i64: 1, 120>}, {pipeline_mode = #tpu.pipeline_mode<synchronous>, transform_indices = @transform_11, window_bounds = array<i64: 1, 120>}]} {
    %c0_i32 = arith.constant 0 : i32
    %0 = arith.cmpi eq, %arg0, %c0_i32 : i32
    %1 = arith.extui %0 : i1 to i32
    %c0_i32_0 = arith.constant 0 : i32
    %2 = arith.cmpi ne, %1, %c0_i32_0 : i32
    scf.if %2 {
      %cst_52 = arith.constant 0.000000e+00 : f32
      %82 = vector.broadcast %cst_52 : f32 to vector<1x120xf32>
      %c0_53 = arith.constant 0 : index
      %c0_54 = arith.constant 0 : index
      %83 = vector.load %arg5[%c0_53, %c0_54] : memref<1x120xf32, #tpu.memory_space<vmem>>, vector<1x120xf32>
      tpu.vector_store %arg5[%c0_53, %c0_54], %82 {strides = array<i32>} : memref<1x120xf32, #tpu.memory_space<vmem>>, vector<1x120xf32>,
      %cst_55 = arith.constant 0.000000e+00 : f32
      %84 = vector.broadcast %cst_55 : f32 to vector<1x120xf32>
      %c0_56 = arith.constant 0 : index
      %c0_57 = arith.constant 0 : index
      %85 = vector.load %arg6[%c0_56, %c0_57] : memref<1x120xf32, #tpu.memory_space<vmem>>, vector<1x120xf32>
      tpu.vector_store %arg6[%c0_56, %c0_57], %84 {strides = array<i32>} : memref<1x120xf32, #tpu.memory_space<vmem>>, vector<1x120xf32>,
      %cst_58 = arith.constant 0.000000e+00 : f32
      %86 = vector.broadcast %cst_58 : f32 to vector<1x120xf32>
      %c0_59 = arith.constant 0 : index
      %c0_60 = arith.constant 0 : index
      %87 = vector.load %arg7[%c0_59, %c0_60] : memref<1x120xf32, #tpu.memory_space<vmem>>, vector<1x120xf32>
      tpu.vector_store %arg7[%c0_59, %c0_60], %86 {strides = array<i32>} : memref<1x120xf32, #tpu.memory_space<vmem>>, vector<1x120xf32>,
      %cst_61 = arith.constant 0.000000e+00 : f32
      %88 = vector.broadcast %cst_61 : f32 to vector<1x120xf32>
      %c0_62 = arith.constant 0 : index
      %c0_63 = arith.constant 0 : index
      %89 = vector.load %arg8[%c0_62, %c0_63] : memref<1x120xf32, #tpu.memory_space<vmem>>, vector<1x120xf32>
      tpu.vector_store %arg8[%c0_62, %c0_63], %88 {strides = array<i32>} : memref<1x120xf32, #tpu.memory_space<vmem>>, vector<1x120xf32>,
      %cst_64 = arith.constant 0.000000e+00 : f32
      %90 = vector.broadcast %cst_64 : f32 to vector<1x120xf32>
      %c0_65 = arith.constant 0 : index
      %c0_66 = arith.constant 0 : index
      %91 = vector.load %arg9[%c0_65, %c0_66] : memref<1x120xf32, #tpu.memory_space<vmem>>, vector<1x120xf32>
      tpu.vector_store %arg9[%c0_65, %c0_66], %90 {strides = array<i32>} : memref<1x120xf32, #tpu.memory_space<vmem>>, vector<1x120xf32>,
      %cst_67 = arith.constant 0.000000e+00 : f32
      %92 = vector.broadcast %cst_67 : f32 to vector<1x120xf32>
      %c0_68 = arith.constant 0 : index
      %c0_69 = arith.constant 0 : index
      %93 = vector.load %arg10[%c0_68, %c0_69] : memref<1x120xf32, #tpu.memory_space<vmem>>, vector<1x120xf32>
      tpu.vector_store %arg10[%c0_68, %c0_69], %92 {strides = array<i32>} : memref<1x120xf32, #tpu.memory_space<vmem>>, vector<1x120xf32>,
      %cst_70 = arith.constant 0.000000e+00 : f32
      %94 = vector.broadcast %cst_70 : f32 to vector<1x120xf32>
      %c0_71 = arith.constant 0 : index
      %c0_72 = arith.constant 0 : index
      %95 = vector.load %arg11[%c0_71, %c0_72] : memref<1x120xf32, #tpu.memory_space<vmem>>, vector<1x120xf32>
      tpu.vector_store %arg11[%c0_71, %c0_72], %94 {strides = array<i32>} : memref<1x120xf32, #tpu.memory_space<vmem>>, vector<1x120xf32>,
      %cst_73 = arith.constant 0.000000e+00 : f32
      %96 = vector.broadcast %cst_73 : f32 to vector<1x120xf32>
      %c0_74 = arith.constant 0 : index
      %c0_75 = arith.constant 0 : index
      %97 = vector.load %arg12[%c0_74, %c0_75] : memref<1x120xf32, #tpu.memory_space<vmem>>, vector<1x120xf32>
      tpu.vector_store %arg12[%c0_74, %c0_75], %96 {strides = array<i32>} : memref<1x120xf32, #tpu.memory_space<vmem>>, vector<1x120xf32>,
    } else {
    }
    %c0 = arith.constant 0 : index
    %c0_1 = arith.constant 0 : index
    %3 = vector.load %arg1[%c0, %c0_1] : memref<32x120xf32, #tpu.memory_space<vmem>>, vector<32x120xf32>
    %c0_2 = arith.constant 0 : index
    %c0_3 = arith.constant 0 : index
    %4 = vector.load %arg2[%c0_2, %c0_3] : memref<32x120xi8, #tpu.memory_space<vmem>>, vector<32x120xi8>
    %5 = arith.extsi %4 : vector<32x120xi8> to vector<32x120xi32>
    %c1_i32 = arith.constant 1 : i32
    %6 = vector.broadcast %c1_i32 : i32 to vector<32x120xi32>
    %7 = arith.cmpi eq, %5, %6 : vector<32x120xi32>
    %8 = arith.extui %7 : vector<32x120xi1> to vector<32x120xi32>
    %9 = arith.sitofp %8 : vector<32x120xi32> to vector<32x120xf32>
    %c0_i32_4 = arith.constant 0 : i32
    %10 = vector.broadcast %c0_i32_4 : i32 to vector<32x120xi32>
    %11 = arith.cmpi eq, %5, %10 : vector<32x120xi32>
    %12 = arith.extui %11 : vector<32x120xi1> to vector<32x120xi32>
    %13 = arith.sitofp %12 : vector<32x120xi32> to vector<32x120xf32>
    %c0_5 = arith.constant 0 : index
    %c0_6 = arith.constant 0 : index
    %14 = vector.load %arg3[%c0_5, %c0_6] : memref<1x120xf32, #tpu.memory_space<vmem>>, vector<1x120xf32>
    %15 = vector.broadcast %14 : vector<1x120xf32> to vector<32x120xf32>
    %16 = arith.subf %3, %15 : vector<32x120xf32>
    %c0_7 = arith.constant 0 : index
    %c0_8 = arith.constant 0 : index
    %17 = vector.load %arg4[%c0_7, %c0_8] : memref<1x120xf32, #tpu.memory_space<vmem>>, vector<1x120xf32>
    %18 = vector.broadcast %17 : vector<1x120xf32> to vector<32x120xf32>
    %19 = arith.subf %3, %18 : vector<32x120xf32>
    %20 = arith.mulf %16, %16 : vector<32x120xf32>
    %21 = arith.mulf %20, %9 : vector<32x120xf32>
    %22 = arith.mulf %19, %19 : vector<32x120xf32>
    %23 = arith.mulf %22, %13 : vector<32x120xf32>
    %24 = arith.mulf %3, %9 : vector<32x120xf32>
    %25 = arith.mulf %3, %13 : vector<32x120xf32>
    %c0_9 = arith.constant 0 : index
    %c0_10 = arith.constant 0 : index
    %26 = vector.load %arg5[%c0_9, %c0_10] : memref<1x120xf32, #tpu.memory_space<vmem>>, vector<1x120xf32>
    %cst = arith.constant dense<0.000000e+00> : vector<120xf32>
    %27 = vector.multi_reduction <add>, %21, %cst [0] : vector<32x120xf32> to vector<120xf32>
    %28 = vector.shape_cast %27 : vector<120xf32> to vector<1x120xf32>
    %29 = arith.addf %26, %28 : vector<1x120xf32>
    %c0_11 = arith.constant 0 : index
    %c0_12 = arith.constant 0 : index
    %30 = vector.load %arg5[%c0_11, %c0_12] : memref<1x120xf32, #tpu.memory_space<vmem>>, vector<1x120xf32>
    tpu.vector_store %arg5[%c0_11, %c0_12], %29 {strides = array<i32>} : memref<1x120xf32, #tpu.memory_space<vmem>>, vector<1x120xf32>,
    %c0_13 = arith.constant 0 : index
    %c0_14 = arith.constant 0 : index
    %31 = vector.load %arg6[%c0_13, %c0_14] : memref<1x120xf32, #tpu.memory_space<vmem>>, vector<1x120xf32>
    %cst_15 = arith.constant dense<0.000000e+00> : vector<120xf32>
    %32 = vector.multi_reduction <add>, %23, %cst_15 [0] : vector<32x120xf32> to vector<120xf32>
    %33 = vector.shape_cast %32 : vector<120xf32> to vector<1x120xf32>
    %34 = arith.addf %31, %33 : vector<1x120xf32>
    %c0_16 = arith.constant 0 : index
    %c0_17 = arith.constant 0 : index
    %35 = vector.load %arg6[%c0_16, %c0_17] : memref<1x120xf32, #tpu.memory_space<vmem>>, vector<1x120xf32>
    tpu.vector_store %arg6[%c0_16, %c0_17], %34 {strides = array<i32>} : memref<1x120xf32, #tpu.memory_space<vmem>>, vector<1x120xf32>,
    %c0_18 = arith.constant 0 : index
    %c0_19 = arith.constant 0 : index
    %36 = vector.load %arg7[%c0_18, %c0_19] : memref<1x120xf32, #tpu.memory_space<vmem>>, vector<1x120xf32>
    %cst_20 = arith.constant dense<0.000000e+00> : vector<120xf32>
    %37 = vector.multi_reduction <add>, %24, %cst_20 [0] : vector<32x120xf32> to vector<120xf32>
    %38 = vector.shape_cast %37 : vector<120xf32> to vector<1x120xf32>
    %39 = arith.addf %36, %38 : vector<1x120xf32>
    %c0_21 = arith.constant 0 : index
    %c0_22 = arith.constant 0 : index
    %40 = vector.load %arg7[%c0_21, %c0_22] : memref<1x120xf32, #tpu.memory_space<vmem>>, vector<1x120xf32>
    tpu.vector_store %arg7[%c0_21, %c0_22], %39 {strides = array<i32>} : memref<1x120xf32, #tpu.memory_space<vmem>>, vector<1x120xf32>,
    %c0_23 = arith.constant 0 : index
    %c0_24 = arith.constant 0 : index
    %41 = vector.load %arg8[%c0_23, %c0_24] : memref<1x120xf32, #tpu.memory_space<vmem>>, vector<1x120xf32>
    %cst_25 = arith.constant dense<0.000000e+00> : vector<120xf32>
    %42 = vector.multi_reduction <add>, %25, %cst_25 [0] : vector<32x120xf32> to vector<120xf32>
    %43 = vector.shape_cast %42 : vector<120xf32> to vector<1x120xf32>
    %44 = arith.addf %41, %43 : vector<1x120xf32>
    %c0_26 = arith.constant 0 : index
    %c0_27 = arith.constant 0 : index
    %45 = vector.load %arg8[%c0_26, %c0_27] : memref<1x120xf32, #tpu.memory_space<vmem>>, vector<1x120xf32>
    tpu.vector_store %arg8[%c0_26, %c0_27], %44 {strides = array<i32>} : memref<1x120xf32, #tpu.memory_space<vmem>>, vector<1x120xf32>,
    %c0_28 = arith.constant 0 : index
    %c0_29 = arith.constant 0 : index
    %46 = vector.load %arg9[%c0_28, %c0_29] : memref<1x120xf32, #tpu.memory_space<vmem>>, vector<1x120xf32>
    %cst_30 = arith.constant 0.000000e+00 : f32
    %47 = vector.broadcast %cst_30 : f32 to vector<32x120xf32>
    %48 = arith.cmpf one, %21, %47 : vector<32x120xf32>
    %49 = arith.extui %48 : vector<32x120xi1> to vector<32x120xi32>
    %50 = arith.sitofp %49 : vector<32x120xi32> to vector<32x120xf32>
    %cst_31 = arith.constant dense<0.000000e+00> : vector<120xf32>
    %51 = vector.multi_reduction <add>, %50, %cst_31 [0] : vector<32x120xf32> to vector<120xf32>
    %52 = vector.shape_cast %51 : vector<120xf32> to vector<1x120xf32>
    %53 = arith.addf %46, %52 : vector<1x120xf32>
    %c0_32 = arith.constant 0 : index
    %c0_33 = arith.constant 0 : index
    %54 = vector.load %arg9[%c0_32, %c0_33] : memref<1x120xf32, #tpu.memory_space<vmem>>, vector<1x120xf32>
    tpu.vector_store %arg9[%c0_32, %c0_33], %53 {strides = array<i32>} : memref<1x120xf32, #tpu.memory_space<vmem>>, vector<1x120xf32>,
    %c0_34 = arith.constant 0 : index
    %c0_35 = arith.constant 0 : index
    %55 = vector.load %arg10[%c0_34, %c0_35] : memref<1x120xf32, #tpu.memory_space<vmem>>, vector<1x120xf32>
    %cst_36 = arith.constant 0.000000e+00 : f32
    %56 = vector.broadcast %cst_36 : f32 to vector<32x120xf32>
    %57 = arith.cmpf one, %23, %56 : vector<32x120xf32>
    %58 = arith.extui %57 : vector<32x120xi1> to vector<32x120xi32>
    %59 = arith.sitofp %58 : vector<32x120xi32> to vector<32x120xf32>
    %cst_37 = arith.constant dense<0.000000e+00> : vector<120xf32>
    %60 = vector.multi_reduction <add>, %59, %cst_37 [0] : vector<32x120xf32> to vector<120xf32>
    %61 = vector.shape_cast %60 : vector<120xf32> to vector<1x120xf32>
    %62 = arith.addf %55, %61 : vector<1x120xf32>
    %c0_38 = arith.constant 0 : index
    %c0_39 = arith.constant 0 : index
    %63 = vector.load %arg10[%c0_38, %c0_39] : memref<1x120xf32, #tpu.memory_space<vmem>>, vector<1x120xf32>
    tpu.vector_store %arg10[%c0_38, %c0_39], %62 {strides = array<i32>} : memref<1x120xf32, #tpu.memory_space<vmem>>, vector<1x120xf32>,
    %c0_40 = arith.constant 0 : index
    %c0_41 = arith.constant 0 : index
    %64 = vector.load %arg11[%c0_40, %c0_41] : memref<1x120xf32, #tpu.memory_space<vmem>>, vector<1x120xf32>
    %cst_42 = arith.constant 0.000000e+00 : f32
    %65 = vector.broadcast %cst_42 : f32 to vector<32x120xf32>
    %66 = arith.cmpf one, %24, %65 : vector<32x120xf32>
    %67 = arith.extui %66 : vector<32x120xi1> to vector<32x120xi32>
    %68 = arith.sitofp %67 : vector<32x120xi32> to vector<32x120xf32>
    %cst_43 = arith.constant dense<0.000000e+00> : vector<120xf32>
    %69 = vector.multi_reduction <add>, %68, %cst_43 [0] : vector<32x120xf32> to vector<120xf32>
    %70 = vector.shape_cast %69 : vector<120xf32> to vector<1x120xf32>
    %71 = arith.addf %64, %70 : vector<1x120xf32>
    %c0_44 = arith.constant 0 : index
    %c0_45 = arith.constant 0 : index
    %72 = vector.load %arg11[%c0_44, %c0_45] : memref<1x120xf32, #tpu.memory_space<vmem>>, vector<1x120xf32>
    tpu.vector_store %arg11[%c0_44, %c0_45], %71 {strides = array<i32>} : memref<1x120xf32, #tpu.memory_space<vmem>>, vector<1x120xf32>,
    %c0_46 = arith.constant 0 : index
    %c0_47 = arith.constant 0 : index
    %73 = vector.load %arg12[%c0_46, %c0_47] : memref<1x120xf32, #tpu.memory_space<vmem>>, vector<1x120xf32>
    %cst_48 = arith.constant 0.000000e+00 : f32
    %74 = vector.broadcast %cst_48 : f32 to vector<32x120xf32>
    %75 = arith.cmpf one, %25, %74 : vector<32x120xf32>
    %76 = arith.extui %75 : vector<32x120xi1> to vector<32x120xi32>
    %77 = arith.sitofp %76 : vector<32x120xi32> to vector<32x120xf32>
    %cst_49 = arith.constant dense<0.000000e+00> : vector<120xf32>
    %78 = vector.multi_reduction <add>, %77, %cst_49 [0] : vector<32x120xf32> to vector<120xf32>
    %79 = vector.shape_cast %78 : vector<120xf32> to vector<1x120xf32>
    %80 = arith.addf %73, %79 : vector<1x120xf32>
    %c0_50 = arith.constant 0 : index
    %c0_51 = arith.constant 0 : index
    %81 = vector.load %arg12[%c0_50, %c0_51] : memref<1x120xf32, #tpu.memory_space<vmem>>, vector<1x120xf32>
    tpu.vector_store %arg12[%c0_50, %c0_51], %80 {strides = array<i32>} : memref<1x120xf32, #tpu.memory_space<vmem>>, vector<1x120xf32>,
    return
  }
  func.func @transform_0(%arg0: i32) -> (i32, i32) {
    %c0_i32 = arith.constant 0 : i32
    %c0_i32_0 = arith.constant 0 : i32
    return %arg0, %c0_i32 : i32, i32
  }
  func.func @transform_1(%arg0: i32) -> (i32, i32) {
    %c0_i32 = arith.constant 0 : i32
    %c0_i32_0 = arith.constant 0 : i32
    return %arg0, %c0_i32 : i32, i32
  }
  func.func @transform_2(%arg0: i32) -> (i32, i32) {
    %c0_i32 = arith.constant 0 : i32
    %c0_i32_0 = arith.constant 0 : i32
    %c0_i32_1 = arith.constant 0 : i32
    return %c0_i32, %c0_i32_0 : i32, i32
  }
  func.func @transform_3(%arg0: i32) -> (i32, i32) {
    %c0_i32 = arith.constant 0 : i32
    %c0_i32_0 = arith.constant 0 : i32
    %c0_i32_1 = arith.constant 0 : i32
    return %c0_i32, %c0_i32_0 : i32, i32
  }
  func.func @transform_4(%arg0: i32) -> (i32, i32) {
    %c0_i32 = arith.constant 0 : i32
    %c0_i32_0 = arith.constant 0 : i32
    %c0_i32_1 = arith.constant 0 : i32
    return %c0_i32, %c0_i32_0 : i32, i32
  }
  func.func @transform_5(%arg0: i32) -> (i32, i32) {
    %c0_i32 = arith.constant 0 : i32
    %c0_i32_0 = arith.constant 0 : i32
    %c0_i32_1 = arith.constant 0 : i32
    return %c0_i32, %c0_i32_0 : i32, i32
  }
  func.func @transform_6(%arg0: i32) -> (i32, i32) {
    %c0_i32 = arith.constant 0 : i32
    %c0_i32_0 = arith.constant 0 : i32
    %c0_i32_1 = arith.constant 0 : i32
    return %c0_i32, %c0_i32_0 : i32, i32
  }
  func.func @transform_7(%arg0: i32) -> (i32, i32) {
    %c0_i32 = arith.constant 0 : i32
    %c0_i32_0 = arith.constant 0 : i32
    %c0_i32_1 = arith.constant 0 : i32
    return %c0_i32, %c0_i32_0 : i32, i32
  }
  func.func @transform_8(%arg0: i32) -> (i32, i32) {
    %c0_i32 = arith.constant 0 : i32
    %c0_i32_0 = arith.constant 0 : i32
    %c0_i32_1 = arith.constant 0 : i32
    return %c0_i32, %c0_i32_0 : i32, i32
  }
  func.func @transform_9(%arg0: i32) -> (i32, i32) {
    %c0_i32 = arith.constant 0 : i32
    %c0_i32_0 = arith.constant 0 : i32
    %c0_i32_1 = arith.constant 0 : i32
    return %c0_i32, %c0_i32_0 : i32, i32
  }
  func.func @transform_10(%arg0: i32) -> (i32, i32) {
    %c0_i32 = arith.constant 0 : i32
    %c0_i32_0 = arith.constant 0 : i32
    %c0_i32_1 = arith.constant 0 : i32
    return %c0_i32, %c0_i32_0 : i32, i32
  }
  func.func @transform_11(%arg0: i32) -> (i32, i32) {
    %c0_i32 = arith.constant 0 : i32
    %c0_i32_0 = arith.constant 0 : i32
    %c0_i32_1 = arith.constant 0 : i32
    return %c0_i32, %c0_i32_0 : i32, i32
  }
}

</mosaic_0001>

<llo_original>
// kernel: tpu_custom_call.1
$region0: #{tpu_custom_call.1}
  #allocation0 [shape = 'u32[]', space=smem, size = 0x4, offset = 0x4, fixed_abs, tag = 'smem constant byte address 0x4 - core index']
  #allocation1 [shape = 'u32[144,128]{1,0:T(1,128)}', space=vmem, size = 0x12000, scoped, tag = 'internal scratch']
  %s0 = inlined_call_operand.hbm [shape: f32[32,120], index: 0, kind: input, shape index: {}]
  %s1 = inlined_call_operand.hbm [shape: s8[32,120], index: 1, kind: input, shape index: {}]
  %s2 = inlined_call_operand.vmem [shape: f32[1,120], index: 2, kind: input, shape index: {}]
  %s3 = inlined_call_operand.vmem [shape: f32[1,120], index: 3, kind: input, shape index: {}]
  %s4 = inlined_call_operand.hbm [shape: f32[1,120], index: 4, kind: output, shape index: {0}]
  %s5 = inlined_call_operand.hbm [shape: f32[1,120], index: 5, kind: output, shape index: {1}]
  %s6 = inlined_call_operand.hbm [shape: f32[1,120], index: 6, kind: output, shape index: {2}]
  %s7 = inlined_call_operand.hbm [shape: f32[1,120], index: 7, kind: output, shape index: {3}]
  %s8 = inlined_call_operand.hbm [shape: f32[1,120], index: 8, kind: output, shape index: {4}]
  %s9 = inlined_call_operand.hbm [shape: f32[1,120], index: 9, kind: output, shape index: {5}]
  %s10 = inlined_call_operand.hbm [shape: f32[1,120], index: 10, kind: output, shape index: {6}]
  %s11 = inlined_call_operand.hbm [shape: f32[1,120], index: 11, kind: output, shape index: {7}]
  %12 = xla_tuple %s4, %s5, %s6, %s7, %s8, %s9, %s10, %s11
  %s13 = sld [smem:[#allocation0]]
  $region94: #{tpu_custom_call.1} parent=0
    _
  %s15 = ssub.s32 1, %s13
  %s16 = scalar_select 0, %s15, %s13
  $region1: #{tpu_custom_call.1} parent=0
    #allocation2 [shape = 'u8[16384]{0}', space=vmem, size = 0x4000, scoped, tag = 'input window, operand 0, single buffered']
    #allocation3 [shape = 's32[1]{0}', space=sflag, size = 0x4, scoped, tag = 'scoped memory for tpu_custom_call.1']
    #allocation4 [shape = 's32[1]{0}', space=sflag, size = 0x4, scoped, tag = 'scoped memory for tpu_custom_call.1']
    #allocation5 [shape = 'u8[4096]{0}', space=vmem, size = 0x1000, scoped, tag = 'input window, operand 1, single buffered']
    #allocation6 [shape = 's32[1]{0}', space=sflag, size = 0x4, scoped, tag = 'scoped memory for tpu_custom_call.1']
    #allocation7 [shape = 'u8[512]{0}', space=vmem, size = 0x400, scoped, tag = 'output window, operand 0, single buffered']
    #allocation8 [shape = 'u8[512]{0}', space=vmem, size = 0x400, scoped, tag = 'output window, operand 1, single buffered']
    #allocation9 [shape = 's32[1]{0}', space=sflag, size = 0x4, scoped, tag = 'scoped memory for tpu_custom_call.1']
    #allocation10 [shape = 'u8[512]{0}', space=vmem, size = 0x400, scoped, tag = 'output window, operand 2, single buffered']
    #allocation11 [shape = 'u8[512]{0}', space=vmem, size = 0x400, scoped, tag = 'output window, operand 3, single buffered']
    #allocation12 [shape = 's32[1]{0}', space=sflag, size = 0x4, scoped, tag = 'scoped memory for tpu_custom_call.1']
    #allocation13 [shape = 'u8[512]{0}', space=vmem, size = 0x400, scoped, tag = 'output window, operand 4, single buffered']
    #allocation14 [shape = 'u8[512]{0}', space=vmem, size = 0x400, scoped, tag = 'output window, operand 5, single buffered']
    #allocation15 [shape = 's32[1]{0}', space=sflag, size = 0x4, scoped, tag = 'scoped memory for tpu_custom_call.1']
    #allocation16 [shape = 'u8[512]{0}', space=vmem, size = 0x400, scoped, tag = 'output window, operand 6, single buffered']
    #allocation17 [shape = 'u8[512]{0}', space=vmem, size = 0x400, scoped, tag = 'output window, operand 7, single buffered']
    #allocation18 [shape = 's32[1]{0}', space=sflag, size = 0x4, scoped, tag = 'scoped memory for tpu_custom_call.1']
    %17 = vsyncpa [#allocation3], 0
    %18 = vsyncpa [#allocation6], 0
    %19 = vsyncpa [#allocation4], 0
    %20 = vsyncpa [#allocation9], 0
    %21 = vsyncpa [#allocation12], 0
    %22 = vsyncpa [#allocation15], 0
    %23 = vsyncpa [#allocation18], 0
    // Predicated region
    $region2: #{tpu_custom_call.1} parent=1 // pred_check
      _
    $region3: #{tpu_custom_call.1} parent=1 // pred_check_branch
      %25 = sbr.rel (0) target = $region5
    $region4: #{tpu_custom_call.1} parent=1 // pred_region
      %s27 = ssub.s32 512, 512
      %28 = vsyncadd [#allocation3], %s27
      %s29 = sshll.u32 [#allocation2], 4
      %s30 = int_to_ptr.vmem [resolvable:$true] %s29
      %35 = dma.hbm_to_vmem [thread:$0]  %s0, 512, %s30, [#allocation3], 128, 128, 8
    $region5: #{tpu_custom_call.1} parent=1 // pred_fallthru
      _
    // Predicated region
    $region6: #{tpu_custom_call.1} parent=1 // pred_check
      _
    $region7: #{tpu_custom_call.1} parent=1 // pred_check_branch
      %37 = sbr.rel (0) target = $region9
    $region8: #{tpu_custom_call.1} parent=1 // pred_region
      %s39 = ssub.s32 128, 128
      %40 = vsyncadd [#allocation6], %s39
      %s42 = sshll.u32 [#allocation5], 4
      %s43 = int_to_ptr.vmem [resolvable:$true] %s42
      %45 = dma.hbm_to_vmem [thread:$0]  %s1, 128, %s43, [#allocation6]
    $region9: #{tpu_custom_call.1} parent=1 // pred_fallthru
      _
    // Predicated region
    $region10: #{tpu_custom_call.1} parent=1 // pred_check
      _
    $region11: #{tpu_custom_call.1} parent=1 // pred_check_branch
      %47 = sbr.rel (0) target = $region13
    $region12: #{tpu_custom_call.1} parent=1 // pred_region
      _
    $region13: #{tpu_custom_call.1} parent=1 // pred_fallthru
      _
    // Predicated region
    $region14: #{tpu_custom_call.1} parent=1 // pred_check
      _
    $region15: #{tpu_custom_call.1} parent=1 // pred_check_branch
      %49 = sbr.rel (0) target = $region17
    $region16: #{tpu_custom_call.1} parent=1 // pred_region
      _
    $region17: #{tpu_custom_call.1} parent=1 // pred_fallthru
      _
    // Predicated region
    $region18: #{tpu_custom_call.1} parent=1 // pred_check
      _
    $region19: #{tpu_custom_call.1} parent=1 // pred_check_branch
      %51 = sbr.rel (0) target = $region21
    $region20: #{tpu_custom_call.1} parent=1 // pred_region
      %52 = dma.done [#allocation3], 512
    $region21: #{tpu_custom_call.1} parent=1 // pred_fallthru
      _
    // Predicated region
    $region22: #{tpu_custom_call.1} parent=1 // pred_check
      _
    $region23: #{tpu_custom_call.1} parent=1 // pred_check_branch
      %54 = sbr.rel (0) target = $region25
    $region24: #{tpu_custom_call.1} parent=1 // pred_region
      %55 = dma.done [#allocation6], 128
    $region25: #{tpu_custom_call.1} parent=1 // pred_fallthru
      _
    %p56 = scmp.eq.s32.totalorder 0, 0
    // Predicated region
    $region26: #{tpu_custom_call.1} parent=1 // pred_check
      %p57 = pneg %p56
    $region27: #{tpu_custom_call.1} parent=1 // pred_check_branch
      %59 = sbr.rel (%p57) target = $region29
    $region28: #{tpu_custom_call.1} parent=1 // pred_region
      %vm60 = vcmask 974848
      %61 = vst.msk [vmem:[#allocation7] sm:$0x1] %vm60, 0.0
      %62 = vst.msk [vmem:[#allocation8] sm:$0x1] %vm60, 0.0
      %63 = vst.msk [vmem:[#allocation10] sm:$0x1] %vm60, 0.0
      %64 = vst.msk [vmem:[#allocation11] sm:$0x1] %vm60, 0.0
      %65 = vst.msk [vmem:[#allocation13] sm:$0x1] %vm60, 0.0
      %66 = vst.msk [vmem:[#allocation14] sm:$0x1] %vm60, 0.0
      %67 = vst.msk [vmem:[#allocation16] sm:$0x1] %vm60, 0.0
      %68 = vst.msk [vmem:[#allocation17] sm:$0x1] %vm60, 0.0
    $region29: #{tpu_custom_call.1} parent=1 // pred_fallthru
      _
    %v69 = vld [vmem:[#allocation2] sm:$0xff]
    %v70 = vld [vmem:[#allocation2 + $0x8] sm:$0xff]
    %v71 = vld [vmem:[#allocation2 + $0x10] sm:$0xff]
    %v72 = vld [vmem:[#allocation2 + $0x18] sm:$0xff]
    %v73 = vld [vmem:[#allocation5] sm:$0xff]
    %v74 = vunpack.c.0.s8 %v73
    %v75 = vunpack.c.1.s8 %v73
    %v76 = vunpack.c.2.s8 %v73
    %v77 = vunpack.c.3.s8 %v73
    %vm78 = vcmp.eq.s32.totalorder %v74, 1
    %vm79 = vcmp.eq.s32.totalorder %v75, 1
    %vm80 = vcmp.eq.s32.totalorder %v76, 1
    %vm81 = vcmp.eq.s32.totalorder %v77, 1
    %v82 = vsel %vm78, 1, 0
    %v83 = vsel %vm79, 1, 0
    %v84 = vsel %vm80, 1, 0
    %v85 = vsel %vm81, 1, 0
    %v86 = vcvt.s32.f32 %v82
    %v87 = vcvt.s32.f32 %v83
    %v88 = vcvt.s32.f32 %v84
    %v89 = vcvt.s32.f32 %v85
    %vm90 = vcmp.eq.s32.totalorder %v74, 0
    %vm91 = vcmp.eq.s32.totalorder %v75, 0
    %vm92 = vcmp.eq.s32.totalorder %v76, 0
    %vm93 = vcmp.eq.s32.totalorder %v77, 0
    %v94 = vsel %vm90, 1, 0
    %v95 = vsel %vm91, 1, 0
    %v96 = vsel %vm92, 1, 0
    %v97 = vsel %vm93, 1, 0
    %v98 = vcvt.s32.f32 %v94
    %v99 = vcvt.s32.f32 %v95
    %v100 = vcvt.s32.f32 %v96
    %v101 = vcvt.s32.f32 %v97
    %v102 = vld [vmem:[%s2] sm:$0x1]
    %v104 = vlaneseq
    %v105 = vshrl.u32 %v104, 7
    %v106 = vsub.s32 0, %v105
    %v107 = vrot.slane %v102, %v106
    %v109 = vsub.f32 %v69, %v107
    %v110 = vsub.f32 %v70, %v107
    %v111 = vsub.f32 %v71, %v107
    %v112 = vsub.f32 %v72, %v107
    %v113 = vld [vmem:[%s3] sm:$0x1]
    %v115 = vlaneseq
    %v116 = vshrl.u32 %v115, 7
    %v117 = vsub.s32 0, %v116
    %v118 = vrot.slane %v113, %v117
    %v120 = vsub.f32 %v69, %v118
    %v121 = vsub.f32 %v70, %v118
    %v122 = vsub.f32 %v71, %v118
    %v123 = vsub.f32 %v72, %v118
    %v124 = vmul.f32 %v109, %v109
    %v125 = vmul.f32 %v110, %v110
    %v126 = vmul.f32 %v111, %v111
    %v127 = vmul.f32 %v112, %v112
    %v128 = vmul.f32 %v124, %v86
    %v129 = vmul.f32 %v125, %v87
    %v130 = vmul.f32 %v126, %v88
    %v131 = vmul.f32 %v127, %v89
    %v132 = vmul.f32 %v120, %v120
    %v133 = vmul.f32 %v121, %v121
    %v134 = vmul.f32 %v122, %v122
    %v135 = vmul.f32 %v123, %v123
    %v136 = vmul.f32 %v132, %v98
    %v137 = vmul.f32 %v133, %v99
    %v138 = vmul.f32 %v134, %v100
    %v139 = vmul.f32 %v135, %v101
    %v140 = vmul.f32 %v69, %v86
    %v141 = vmul.f32 %v70, %v87
    %v142 = vmul.f32 %v71, %v88
    %v143 = vmul.f32 %v72, %v89
    %v144 = vmul.f32 %v69, %v98
    %v145 = vmul.f32 %v70, %v99
    %v146 = vmul.f32 %v71, %v100
    %v147 = vmul.f32 %v72, %v101
    %v148 = vld [vmem:[#allocation7] sm:$0x1]
    %vm149 = vcmask 982016
    %v150 = vsel %vm149, %v128, 0.0
    %v151 = vsel %vm149, %v129, 0.0
    %v152 = vadd.f32 %v150, %v151
    %v153 = vsel %vm149, %v130, 0.0
    %v154 = vadd.f32 %v152, %v153
    %v155 = vsel %vm149, %v131, 0.0
    %v156 = vadd.f32 %v154, %v155
    %v157 = vrot.slane %v156, 4
    %v158 = vadd.f32 %v156, %v157
    %v159 = vrot.slane %v158, 2
    %v160 = vadd.f32 %v158, %v159
    %v161 = vrot.slane %v160, 1
    %v162 = vadd.f32 %v160, %v161
    %v163 = vadd.f32 %v148, %v162
    %vm164 = vcmask 974848
    %165 = vst.msk [vmem:[#allocation7] sm:$0x1] %vm164, %v163
    %v166 = vld [vmem:[#allocation8] sm:$0x1]
    %v167 = vsel %vm149, %v136, 0.0
    %v168 = vsel %vm149, %v137, 0.0
    %v169 = vadd.f32 %v167, %v168
    %v170 = vsel %vm149, %v138, 0.0
    %v171 = vadd.f32 %v169, %v170
    %v172 = vsel %vm149, %v139, 0.0
    %v173 = vadd.f32 %v171, %v172
    %v174 = vrot.slane %v173, 4
    %v175 = vadd.f32 %v173, %v174
    %v176 = vrot.slane %v175, 2
    %v177 = vadd.f32 %v175, %v176
    %v178 = vrot.slane %v177, 1
    %v179 = vadd.f32 %v177, %v178
    %v180 = vadd.f32 %v166, %v179
    %181 = vst.msk [vmem:[#allocation8] sm:$0x1] %vm164, %v180
    %v182 = vld [vmem:[#allocation10] sm:$0x1]
    %v183 = vsel %vm149, %v140, 0.0
    %v184 = vsel %vm149, %v141, 0.0
    %v185 = vadd.f32 %v183, %v184
    %v186 = vsel %vm149, %v142, 0.0
    %v187 = vadd.f32 %v185, %v186
    %v188 = vsel %vm149, %v143, 0.0
    %v189 = vadd.f32 %v187, %v188
    %v190 = vrot.slane %v189, 4
    %v191 = vadd.f32 %v189, %v190
    %v192 = vrot.slane %v191, 2
    %v193 = vadd.f32 %v191, %v192
    %v194 = vrot.slane %v193, 1
    %v195 = vadd.f32 %v193, %v194
    %v196 = vadd.f32 %v182, %v195
    %197 = vst.msk [vmem:[#allocation10] sm:$0x1] %vm164, %v196
    %v198 = vld [vmem:[#allocation11] sm:$0x1]
    %v199 = vsel %vm149, %v144, 0.0
    %v200 = vsel %vm149, %v145, 0.0
    %v201 = vadd.f32 %v199, %v200
    %v202 = vsel %vm149, %v146, 0.0
    %v203 = vadd.f32 %v201, %v202
    %v204 = vsel %vm149, %v147, 0.0
    %v205 = vadd.f32 %v203, %v204
    %v206 = vrot.slane %v205, 4
    %v207 = vadd.f32 %v205, %v206
    %v208 = vrot.slane %v207, 2
    %v209 = vadd.f32 %v207, %v208
    %v210 = vrot.slane %v209, 1
    %v211 = vadd.f32 %v209, %v210
    %v212 = vadd.f32 %v198, %v211
    %213 = vst.msk [vmem:[#allocation11] sm:$0x1] %vm164, %v212
    %v214 = vld [vmem:[#allocation13] sm:$0x1]
    %vm215 = vcmp.ne.f32.partialorder %v128, 0.0
    %vm216 = vcmp.ne.f32.partialorder %v129, 0.0
    %vm217 = vcmp.ne.f32.partialorder %v130, 0.0
    %vm218 = vcmp.ne.f32.partialorder %v131, 0.0
    %v219 = vsel %vm215, 1, 0
    %v220 = vsel %vm216, 1, 0
    %v221 = vsel %vm217, 1, 0
    %v222 = vsel %vm218, 1, 0
    %v223 = vcvt.s32.f32 %v219
    %v224 = vcvt.s32.f32 %v220
    %v225 = vcvt.s32.f32 %v221
    %v226 = vcvt.s32.f32 %v222
    %v227 = vsel %vm149, %v223, 0.0
    %v228 = vsel %vm149, %v224, 0.0
    %v229 = vadd.f32 %v227, %v228
    %v230 = vsel %vm149, %v225, 0.0
    %v231 = vadd.f32 %v229, %v230
    %v232 = vsel %vm149, %v226, 0.0
    %v233 = vadd.f32 %v231, %v232
    %v234 = vrot.slane %v233, 4
    %v235 = vadd.f32 %v233, %v234
    %v236 = vrot.slane %v235, 2
    %v237 = vadd.f32 %v235, %v236
    %v238 = vrot.slane %v237, 1
    %v239 = vadd.f32 %v237, %v238
    %v240 = vadd.f32 %v214, %v239
    %241 = vst.msk [vmem:[#allocation13] sm:$0x1] %vm164, %v240
    %v242 = vld [vmem:[#allocation14] sm:$0x1]
    %vm243 = vcmp.ne.f32.partialorder %v136, 0.0
    %vm244 = vcmp.ne.f32.partialorder %v137, 0.0
    %vm245 = vcmp.ne.f32.partialorder %v138, 0.0
    %vm246 = vcmp.ne.f32.partialorder %v139, 0.0
    %v247 = vsel %vm243, 1, 0
    %v248 = vsel %vm244, 1, 0
    %v249 = vsel %vm245, 1, 0
    %v250 = vsel %vm246, 1, 0
    %v251 = vcvt.s32.f32 %v247
    %v252 = vcvt.s32.f32 %v248
    %v253 = vcvt.s32.f32 %v249
    %v254 = vcvt.s32.f32 %v250
    %v255 = vsel %vm149, %v251, 0.0
    %v256 = vsel %vm149, %v252, 0.0
    %v257 = vadd.f32 %v255, %v256
    %v258 = vsel %vm149, %v253, 0.0
    %v259 = vadd.f32 %v257, %v258
    %v260 = vsel %vm149, %v254, 0.0
    %v261 = vadd.f32 %v259, %v260
    %v262 = vrot.slane %v261, 4
    %v263 = vadd.f32 %v261, %v262
    %v264 = vrot.slane %v263, 2
    %v265 = vadd.f32 %v263, %v264
    %v266 = vrot.slane %v265, 1
    %v267 = vadd.f32 %v265, %v266
    %v268 = vadd.f32 %v242, %v267
    %269 = vst.msk [vmem:[#allocation14] sm:$0x1] %vm164, %v268
    %v270 = vld [vmem:[#allocation16] sm:$0x1]
    %vm271 = vcmp.ne.f32.partialorder %v140, 0.0
    %vm272 = vcmp.ne.f32.partialorder %v141, 0.0
    %vm273 = vcmp.ne.f32.partialorder %v142, 0.0
    %vm274 = vcmp.ne.f32.partialorder %v143, 0.0
    %v275 = vsel %vm271, 1, 0
    %v276 = vsel %vm272, 1, 0
    %v277 = vsel %vm273, 1, 0
    %v278 = vsel %vm274, 1, 0
    %v279 = vcvt.s32.f32 %v275
    %v280 = vcvt.s32.f32 %v276
    %v281 = vcvt.s32.f32 %v277
    %v282 = vcvt.s32.f32 %v278
    %v283 = vsel %vm149, %v279, 0.0
    %v284 = vsel %vm149, %v280, 0.0
    %v285 = vadd.f32 %v283, %v284
    %v286 = vsel %vm149, %v281, 0.0
    %v287 = vadd.f32 %v285, %v286
    %v288 = vsel %vm149, %v282, 0.0
    %v289 = vadd.f32 %v287, %v288
    %v290 = vrot.slane %v289, 4
    %v291 = vadd.f32 %v289, %v290
    %v292 = vrot.slane %v291, 2
    %v293 = vadd.f32 %v291, %v292
    %v294 = vrot.slane %v293, 1
    %v295 = vadd.f32 %v293, %v294
    %v296 = vadd.f32 %v270, %v295
    %297 = vst.msk [vmem:[#allocation16] sm:$0x1] %vm164, %v296
    %v298 = vld [vmem:[#allocation17] sm:$0x1]
    %vm299 = vcmp.ne.f32.partialorder %v144, 0.0
    %vm300 = vcmp.ne.f32.partialorder %v145, 0.0
    %vm301 = vcmp.ne.f32.partialorder %v146, 0.0
    %vm302 = vcmp.ne.f32.partialorder %v147, 0.0
    %v303 = vsel %vm299, 1, 0
    %v304 = vsel %vm300, 1, 0
    %v305 = vsel %vm301, 1, 0
    %v306 = vsel %vm302, 1, 0
    %v307 = vcvt.s32.f32 %v303
    %v308 = vcvt.s32.f32 %v304
    %v309 = vcvt.s32.f32 %v305
    %v310 = vcvt.s32.f32 %v306
    %v311 = vsel %vm149, %v307, 0.0
    %v312 = vsel %vm149, %v308, 0.0
    %v313 = vadd.f32 %v311, %v312
    %v314 = vsel %vm149, %v309, 0.0
    %v315 = vadd.f32 %v313, %v314
    %v316 = vsel %vm149, %v310, 0.0
    %v317 = vadd.f32 %v315, %v316
    %v318 = vrot.slane %v317, 4
    %v319 = vadd.f32 %v317, %v318
    %v320 = vrot.slane %v319, 2
    %v321 = vadd.f32 %v319, %v320
    %v322 = vrot.slane %v321, 1
    %v323 = vadd.f32 %v321, %v322
    %v324 = vadd.f32 %v298, %v323
    %325 = vst.msk [vmem:[#allocation17] sm:$0x1] %vm164, %v324
    // Predicated region
    $region30: #{tpu_custom_call.1} parent=1 // pred_check
      _
    $region31: #{tpu_custom_call.1} parent=1 // pred_check_branch
      %327 = sbr.rel (0) target = $region33
    $region32: #{tpu_custom_call.1} parent=1 // pred_region
      %s329 = ssub.s32 16, 16
      %330 = vsyncadd [#allocation4], %s329
      %s332 = sshll.u32 [#allocation7], 4
      %s333 = int_to_ptr.vmem [resolvable:$true] %s332
      %335 = dma.vmem_to_hbm [thread:$0]  %s333, 16, %s4, [#allocation4]
    $region33: #{tpu_custom_call.1} parent=1 // pred_fallthru
      _
    // Predicated region
    $region34: #{tpu_custom_call.1} parent=1 // pred_check
      _
    $region35: #{tpu_custom_call.1} parent=1 // pred_check_branch
      %337 = sbr.rel (0) target = $region37
    $region36: #{tpu_custom_call.1} parent=1 // pred_region
      %s339 = ssub.s32 16, 16
      %340 = vsyncadd [#allocation9], %s339
      %s342 = sshll.u32 [#allocation8], 4
      %s343 = int_to_ptr.vmem [resolvable:$true] %s342
      %345 = dma.vmem_to_hbm [thread:$0]  %s343, 16, %s5, [#allocation9]
    $region37: #{tpu_custom_call.1} parent=1 // pred_fallthru
      _
    // Predicated region
    $region38: #{tpu_custom_call.1} parent=1 // pred_check
      _
    $region39: #{tpu_custom_call.1} parent=1 // pred_check_branch
      %347 = sbr.rel (0) target = $region41
    $region40: #{tpu_custom_call.1} parent=1 // pred_region
      %s349 = ssub.s32 16, 16
      %350 = vsyncadd [#allocation9], %s349
      %s352 = sshll.u32 [#allocation10], 4
      %s353 = int_to_ptr.vmem [resolvable:$true] %s352
      %355 = dma.vmem_to_hbm [thread:$0]  %s353, 16, %s6, [#allocation9]
    $region41: #{tpu_custom_call.1} parent=1 // pred_fallthru
      _
    // Predicated region
    $region42: #{tpu_custom_call.1} parent=1 // pred_check
      _
    $region43: #{tpu_custom_call.1} parent=1 // pred_check_branch
      %357 = sbr.rel (0) target = $region45
    $region44: #{tpu_custom_call.1} parent=1 // pred_region
      %s359 = ssub.s32 16, 16
      %360 = vsyncadd [#allocation12], %s359
      %s362 = sshll.u32 [#allocation11], 4
      %s363 = int_to_ptr.vmem [resolvable:$true] %s362
      %365 = dma.vmem_to_hbm [thread:$0]  %s363, 16, %s7, [#allocation12]
    $region45: #{tpu_custom_call.1} parent=1 // pred_fallthru
      _
    // Predicated region
    $region46: #{tpu_custom_call.1} parent=1 // pred_check
      _
    $region47: #{tpu_custom_call.1} parent=1 // pred_check_branch
      %367 = sbr.rel (0) target = $region49
    $region48: #{tpu_custom_call.1} parent=1 // pred_region
      %s369 = ssub.s32 16, 16
      %370 = vsyncadd [#allocation12], %s369
      %s372 = sshll.u32 [#allocation13], 4
      %s373 = int_to_ptr.vmem [resolvable:$true] %s372
      %375 = dma.vmem_to_hbm [thread:$0]  %s373, 16, %s8, [#allocation12]
    $region49: #{tpu_custom_call.1} parent=1 // pred_fallthru
      _
    // Predicated region
    $region50: #{tpu_custom_call.1} parent=1 // pred_check
      _
    $region51: #{tpu_custom_call.1} parent=1 // pred_check_branch
      %377 = sbr.rel (0) target = $region53
    $region52: #{tpu_custom_call.1} parent=1 // pred_region
      %s379 = ssub.s32 16, 16
      %380 = vsyncadd [#allocation15], %s379
      %s382 = sshll.u32 [#allocation14], 4
      %s383 = int_to_ptr.vmem [resolvable:$true] %s382
      %385 = dma.vmem_to_hbm [thread:$0]  %s383, 16, %s9, [#allocation15]
    $region53: #{tpu_custom_call.1} parent=1 // pred_fallthru
      _
    // Predicated region
    $region54: #{tpu_custom_call.1} parent=1 // pred_check
      _
    $region55: #{tpu_custom_call.1} parent=1 // pred_check_branch
      %387 = sbr.rel (0) target = $region57
    $region56: #{tpu_custom_call.1} parent=1 // pred_region
      %s389 = ssub.s32 16, 16
      %390 = vsyncadd [#allocation15], %s389
      %s392 = sshll.u32 [#allocation16], 4
      %s393 = int_to_ptr.vmem [resolvable:$true] %s392
      %395 = dma.vmem_to_hbm [thread:$0]  %s393, 16, %s10, [#allocation15]
    $region57: #{tpu_custom_call.1} parent=1 // pred_fallthru
      _
    // Predicated region
    $region58: #{tpu_custom_call.1} parent=1 // pred_check
      _
    $region59: #{tpu_custom_call.1} parent=1 // pred_check_branch
      %397 = sbr.rel (0) target = $region61
    $region60: #{tpu_custom_call.1} parent=1 // pred_region
      %s399 = ssub.s32 16, 16
      %400 = vsyncadd [#allocation18], %s399
      %s402 = sshll.u32 [#allocation17], 4
      %s403 = int_to_ptr.vmem [resolvable:$true] %s402
      %405 = dma.vmem_to_hbm [thread:$0]  %s403, 16, %s11, [#allocation18]
    $region61: #{tpu_custom_call.1} parent=1 // pred_fallthru
      _
    // Predicated region
    $region62: #{tpu_custom_call.1} parent=1 // pred_check
      _
    $region63: #{tpu_custom_call.1} parent=1 // pred_check_branch
      %407 = sbr.rel (0) target = $region65
    $region64: #{tpu_custom_call.1} parent=1 // pred_region
      %408 = dma.done [#allocation4], 16
    $region65: #{tpu_custom_call.1} parent=1 // pred_fallthru
      _
    // Predicated region
    $region66: #{tpu_custom_call.1} parent=1 // pred_check
      _
    $region67: #{tpu_custom_call.1} parent=1 // pred_check_branch
      %410 = sbr.rel (0) target = $region69
    $region68: #{tpu_custom_call.1} parent=1 // pred_region
      %411 = dma.done [#allocation9], 16
    $region69: #{tpu_custom_call.1} parent=1 // pred_fallthru
      _
    // Predicated region
    $region70: #{tpu_custom_call.1} parent=1 // pred_check
      _
    $region71: #{tpu_custom_call.1} parent=1 // pred_check_branch
      %413 = sbr.rel (0) target = $region73
    $region72: #{tpu_custom_call.1} parent=1 // pred_region
      %414 = dma.done [#allocation9], 16
    $region73: #{tpu_custom_call.1} parent=1 // pred_fallthru
      _
    // Predicated region
    $region74: #{tpu_custom_call.1} parent=1 // pred_check
      _
    $region75: #{tpu_custom_call.1} parent=1 // pred_check_branch
      %416 = sbr.rel (0) target = $region77
    $region76: #{tpu_custom_call.1} parent=1 // pred_region
      %417 = dma.done [#allocation12], 16
    $region77: #{tpu_custom_call.1} parent=1 // pred_fallthru
      _
    // Predicated region
    $region78: #{tpu_custom_call.1} parent=1 // pred_check
      _
    $region79: #{tpu_custom_call.1} parent=1 // pred_check_branch
      %419 = sbr.rel (0) target = $region81
    $region80: #{tpu_custom_call.1} parent=1 // pred_region
      %420 = dma.done [#allocation12], 16
    $region81: #{tpu_custom_call.1} parent=1 // pred_fallthru
      _
    // Predicated region
    $region82: #{tpu_custom_call.1} parent=1 // pred_check
      _
    $region83: #{tpu_custom_call.1} parent=1 // pred_check_branch
      %422 = sbr.rel (0) target = $region85
    $region84: #{tpu_custom_call.1} parent=1 // pred_region
      %423 = dma.done [#allocation15], 16
    $region85: #{tpu_custom_call.1} parent=1 // pred_fallthru
      _
    // Predicated region
    $region86: #{tpu_custom_call.1} parent=1 // pred_check
      _
    $region87: #{tpu_custom_call.1} parent=1 // pred_check_branch
      %425 = sbr.rel (0) target = $region89
    $region88: #{tpu_custom_call.1} parent=1 // pred_region
      %426 = dma.done [#allocation15], 16
    $region89: #{tpu_custom_call.1} parent=1 // pred_fallthru
      _
    // Predicated region
    $region90: #{tpu_custom_call.1} parent=1 // pred_check
      _
    $region91: #{tpu_custom_call.1} parent=1 // pred_check_branch
      %428 = sbr.rel (0) target = $region93
    $region92: #{tpu_custom_call.1} parent=1 // pred_region
      %429 = dma.done [#allocation18], 16
    $region93: #{tpu_custom_call.1} parent=1 // pred_fallthru
      _
    %430 = vsyncpa [#allocation3], 1
    %431 = vsyncpa [#allocation6], 1
    %432 = vsyncpa [#allocation4], 1
    %433 = vsyncpa [#allocation9], 1
    %434 = vsyncpa [#allocation12], 1
    %435 = vsyncpa [#allocation15], 1
    %436 = vsyncpa [#allocation18], 1

</llo_original>
